<compile_context>
chip_gen: v6e
topology: v6e:2x2x1
jax: 0.10.0
libtpu: 0.0.40
codegen_flags: <defaults>
</compile_context>

<pallas_src>
import math
import functools

import jax
import jax.numpy as jnp
from jax.experimental import pallas as pl
from jax.experimental.pallas import tpu as pltpu


def _round_up(x, m):
    return ((x + m - 1) // m) * m


# ---------------------------------------------------------------------------
# Kernel 1: fused k/v projection, computed ONCE over all nodes
# (hoisted out of the query-tile grid -> no per-tile recomputation).
# ---------------------------------------------------------------------------
def kv_proj_kernel(x_ref, w_ref, b_ref, kv_ref):
    kv_ref[...] = (
        jnp.dot(x_ref[...], w_ref[...], preferred_element_type=jnp.float32)
        + b_ref[...]
    ).astype(kv_ref.dtype)


# ---------------------------------------------------------------------------
# Kernel 2: masked attention + o_linear + ReLU over one query-row tile.
# ---------------------------------------------------------------------------
def attn_kernel(
    xq_ref,    # (TQ, D)     query-tile node features (compute dtype)
    adj_ref,   # (TQ, Np)    adjacency rows for this tile (int8; 0 = masked)
    kv_ref,    # (Np, 2*Dp)  precomputed [k | v], resident (compute dtype)
    wqh_ref,   # (D, 2*Dp)   fused [wq*scale | wol_x]
    bqh_ref,   # (1, 2*Dp)   fused [bq*scale | bol + bao @ wol_a]  (f32)
    watt_ref,  # (Dp, Dp)    folded wao @ wol_a
    out_ref,   # (TQ, Dp)    f32
    dist_ref,  # (TQ, Np)    f32
    *, dp, n_real,
):
    cd = kv_ref.dtype

    # q / hx projection for this tile only (not redundant across the grid).
    qhx = jnp.dot(xq_ref[...], wqh_ref[...],
                  preferred_element_type=jnp.float32) + bqh_ref[...]
    q, hx = qhx[:, :dp], qhx[:, dp:]          # lane-tile aligned static slices
    k, v = kv_ref[:, :dp], kv_ref[:, dp:]     # (Np, Dp) each, compute dtype

    # scores: bf16 (compute dtype) operands, f32 accumulation on the MXU.
    # The 1/sqrt(D) scale is already folded into wq/bq.
    scores = jax.lax.dot_general(
        q.astype(cd), k, (((1,), (1,)), ((), ())),
        preferred_element_type=jnp.float32)   # (TQ, Np)

    # adjacency mask (int8 streamed from HBM; cast is a cheap VPU unpack).
    adjf = adj_ref[...].astype(jnp.float32)
    scores = jnp.where(adjf == 0.0, jnp.float32(-1e9), scores)
    # padded key columns: strictly below the -1e9 mask value so an all-masked
    # (isolated) row still softmaxes uniformly over the REAL columns only.
    col = jax.lax.broadcasted_iota(jnp.int32, scores.shape, 1)
    scores = jnp.where(col >= n_real, jnp.float32(-1e30), scores)

    # softmax in f32; denominator on the EUP (approx reciprocal, off the VALU).
    m = jnp.max(scores, axis=-1, keepdims=True)
    e = jnp.exp(scores - m)
    s = jnp.sum(e, axis=-1, keepdims=True)
    dist = e * pl.reciprocal(s, approx=True)
    dist_ref[...] = dist

    # value mix (bf16 operands) + folded output projection + o_linear + ReLU.
    att = jnp.dot(dist.astype(cd), v, preferred_element_type=jnp.float32)
    h = hx + jnp.dot(att.astype(watt_ref.dtype), watt_ref[...],
                     preferred_element_type=jnp.float32)
    out_ref[...] = jnp.maximum(h, 0.0)        # lane-dense (Dp-wide) store


def graph_conv(x, adj, params, *, compute_dtype=jnp.bfloat16):
    """x: (1, N, D) or (N, D); adj: (N, N). Returns (out (N, D), dist (N, N))."""
    if x.ndim == 3 and x.shape[0] == 1:
        x = jnp.squeeze(x, axis=0)
    N, D = x.shape
    scale = 1.0 / math.sqrt(D)

    (wq, bq, wk, bk, wv, bv, wao, bao, wol, bol) = params
    wol_x, wol_a = wol[:D, :], wol[D:, :]

    # --- trace-time algebraic folds (free) ---
    w_att = wao @ wol_a                  # (D, D): att out-proj folded into o_linear
    b_hx = bol + bao @ wol_a             # (D,)

    Dp = _round_up(D, 128)               # lane-dense feature dim
    Np = _round_up(N, 128)               # lane-dense key axis (unmasked adj/dist vst/vld)
    cd_bytes = jnp.dtype(compute_dtype).itemsize

    # --- generation-aware query tile + explicit VMEM limit ---
    try:
        vmem_cap = int(pltpu.get_tpu_info().vmem_capacity_bytes)
    except Exception:
        vmem_cap = 64 * 1024 * 1024      # conservative (v7x per-TC) fallback
    budget = int(vmem_cap * 0.75)

    resident = (Np * 2 * Dp * cd_bytes   # kv
                + D * 2 * Dp * cd_bytes  # w_qhx
                + 2 * Dp * 4             # b_qhx
                + Dp * Dp * cd_bytes)    # w_att

    def streamed(tq):                    # per-tile streamed bytes (adj+dist+out+xq)
        return tq * Np * (1 + 4) + tq * Dp * 4 + tq * D * cd_bytes

    TQ = 128
    for cand in (512, 256, 128):         # biggest tile that fits: amortizes ~0.35us/step
        if Np % cand == 0 and 2 * (streamed(cand) + resident) + (2 << 20) <= budget:
            TQ = cand                    # and fills 256-wide MXU rows on v6e/v7x
            break
    vmem_limit = int(min(vmem_cap,
                         max(32 << 20, 2 * (streamed(TQ) + resident) + (4 << 20))))

    # --- fused / padded weights ---
    padc = lambda w: jnp.pad(w, ((0, 0), (0, Dp - w.shape[1])))
    padv = lambda b: jnp.pad(b, (0, Dp - b.shape[0]))
    w_qhx = jnp.concatenate([padc(wq * scale), padc(wol_x)], axis=1).astype(compute_dtype)
    b_qhx = jnp.concatenate([padv(bq * scale), padv(b_hx)]).reshape(1, 2 * Dp).astype(jnp.float32)
    w_kv = jnp.concatenate([padc(wk), padc(wv)], axis=1).astype(compute_dtype)
    b_kv = jnp.concatenate([padv(bk), padv(bv)]).reshape(1, 2 * Dp).astype(jnp.float32)
    w_attp = jnp.pad(w_att, ((0, Dp - D), (0, Dp - D))).astype(compute_dtype)

    xp = jnp.pad(x.astype(jnp.float32), ((0, Np - N), (0, 0))).astype(compute_dtype)
    # int8 adjacency mask: (adj != 0) preserves the `mask == 0` semantics exactly
    # and cuts the N^2 adjacency HBM stream 4x vs f32.
    adjm = jnp.pad((adj != 0).astype(jnp.int8), ((0, Np - N), (0, Np - N)))

    # --- kernel 1: one-pass k/v projection over all nodes ---
    TN = 256 if Np % 256 == 0 else 128
    kv = pl.pallas_call(
        kv_proj_kernel,
        out_shape=jax.ShapeDtypeStruct((Np, 2 * Dp), compute_dtype),
        grid=(Np // TN,),
        in_specs=[pl.BlockSpec((TN, D), lambda i: (i, 0)),
                  pl.BlockSpec((D, 2 * Dp), lambda i: (0, 0)),
                  pl.BlockSpec((1, 2 * Dp), lambda i: (0, 0))],
        out_specs=pl.BlockSpec((TN, 2 * Dp), lambda i: (i, 0)),
        compiler_params=pltpu.CompilerParams(dimension_semantics=("parallel",)),
    )(xp, w_kv, b_kv)

    # --- kernel 2: attention + o_linear + ReLU over query-row tiles ---
    flops = int(2 * Np * D * 2 * Dp        # q/hx projection
                + 4 * Np * Np * Dp         # scores + dist@v
                + 2 * Np * Dp * Dp)        # att @ (wao@wol_a)
    bytes_accessed = int(Np * D * cd_bytes + Np * Np * (1 + 4)
                         + resident + Np * Dp * 4)
    kernel = functools.partial(attn_kernel, dp=Dp, n_real=N)

    out, dist = pl.pallas_call(
        kernel,
        out_shape=(jax.ShapeDtypeStruct((Np, Dp), jnp.float32),
                   jax.ShapeDtypeStruct((Np, Np), jnp.float32)),
        grid=(Np // TQ,),
        in_specs=[
            pl.BlockSpec((TQ, D), lambda i: (i, 0)),        # x query tile (streamed)
            pl.BlockSpec((TQ, Np), lambda i: (i, 0)),       # adj rows, int8 (streamed)
            pl.BlockSpec((Np, 2 * Dp), lambda i: (0, 0)),   # kv (resident)
            pl.BlockSpec((D, 2 * Dp), lambda i: (0, 0)),    # fused q/hx weights
            pl.BlockSpec((1, 2 * Dp), lambda i: (0, 0)),
            pl.BlockSpec((Dp, Dp), lambda i: (0, 0)),       # folded wao @ wol_a
        ],
        out_specs=(pl.BlockSpec((TQ, Dp), lambda i: (i, 0)),
                   pl.BlockSpec((TQ, Np), lambda i: (i, 0))),
        compiler_params=pltpu.CompilerParams(
            dimension_semantics=("parallel",),
            vmem_limit_bytes=vmem_limit),
        cost_estimate=pl.CostEstimate(flops=flops, transcendentals=int(Np * Np),
                                      bytes_accessed=bytes_accessed),
    )(xp, adjm, kv, w_qhx, b_qhx, w_attp)

    return out[:N, :D], dist[:N, :N]


def init_params(key, d_model):
    ks = jax.random.split(key, 10)

    def lin(kw, fan_in, fan_out):
        lim = 1.0 / math.sqrt(fan_in)
        return jax.random.uniform(kw, (fan_in, fan_out), jnp.float32, -lim, lim)

    wq = lin(ks[0], d_model, d_model); bq = jnp.zeros((d_model,), jnp.float32)
    wk = lin(ks[1], d_model, d_model); bk = jnp.zeros((d_model,), jnp.float32)
    wv = lin(ks[2], d_model, d_model); bv = jnp.zeros((d_model,), jnp.float32)
    wao = lin(ks[3], d_model, d_model); bao = jnp.zeros((d_model,), jnp.float32)
    wol = lin(ks[4], 2 * d_model, d_model)
    bol = jax.random.uniform(ks[5], (d_model,), jnp.float32,
                             -1.0 / math.sqrt(2 * d_model), 1.0 / math.sqrt(2 * d_model))
    return (wq, bq, wk, bk, wv, bv, wao, bao, wol, bol)


def reference(x, adj, params):
    if x.ndim == 3 and x.shape[0] == 1:
        x = jnp.squeeze(x, axis=0)
    (wq, bq, wk, bk, wv, bv, wao, bao, wol, bol) = params
    D = x.shape[-1]
    q = x @ wq + bq; k = x @ wk + bk; v = x @ wv + bv
    scores = (q @ k.T) / math.sqrt(D)
    scores = jnp.where(adj == 0.0, -1e9, scores)
    dist = jax.nn.softmax(scores, axis=-1)
    att = (dist @ v) @ wao + bao
    out = jax.nn.relu(jnp.concatenate([x, att], axis=-1) @ wol + bol)
    return out, dist


if __name__ == "__main__":
    d_model = 64
    n_nodes = 8
    key = jax.random.PRNGKey(0)
    kx, kadj, kp = jax.random.split(key, 3)

    x = jax.random.normal(kx, (1, n_nodes, d_model), jnp.float32)
    adj = (jax.random.uniform(kadj, (n_nodes, n_nodes)) > 0.5).astype(jnp.float32)
    adj = jnp.maximum(adj, jnp.eye(n_nodes, dtype=jnp.float32))  # self-loops

    params = init_params(kp, d_model)
    ref_out, ref_dist = reference(x, adj, params)

    # f32 matmul path: tight check (only the approx softmax reciprocal differs).
    out_f32, dist_f32 = graph_conv(x, adj, params, compute_dtype=jnp.float32)
    jax.block_until_ready((out_f32, dist_f32))
    assert jnp.allclose(out_f32, ref_out, atol=5e-3, rtol=5e-3), "f32 output mismatch"
    assert jnp.allclose(dist_f32, ref_dist, atol=5e-3, rtol=5e-3), "f32 dist mismatch"

    # bf16 MXU-operand path (default): looser tolerance (bf16 q/k/v/dist operands).
    out, dist = graph_conv(x, adj, params)
    jax.block_until_ready((out, dist))
    assert jnp.allclose(out, ref_out, atol=5e-2, rtol=5e-2), "bf16 output mismatch"
    assert jnp.allclose(dist, ref_dist, atol=5e-2, rtol=5e-2), "bf16 dist mismatch"

    print("KERNEL_OK")
</pallas_src>

<mosaic_0001>
module attributes {stable_mosaic.version = 11 : i64} {
  func.func @kv_proj_kernel(%arg0: i32, %arg1: memref<128x64xf32, #tpu.memory_space<vmem>>, %arg2: memref<64x256xf32, #tpu.memory_space<vmem>>, %arg3: memref<1x256xf32, #tpu.memory_space<vmem>>, %arg4: memref<128x256xf32, #tpu.memory_space<vmem>>) attributes {dimension_semantics = [#tpu.dimension_semantics<parallel>], iteration_bounds = array<i64: 1>, scalar_prefetch = 0 : i64, scratch_operands = 0 : i64, tpu.core_type = #tpu.core_type<tc>, window_params = [{transform_indices = @transform_0, window_bounds = array<i64: 128, 64>}, {pipeline_mode = #tpu.pipeline_mode<synchronous>, transform_indices = @transform_1, window_bounds = array<i64: 64, 256>}, {pipeline_mode = #tpu.pipeline_mode<synchronous>, transform_indices = @transform_2, window_bounds = array<i64: 1, 256>}, {transform_indices = @transform_3, window_bounds = array<i64: 128, 256>}]} {
    %c0 = arith.constant 0 : index
    %c0_0 = arith.constant 0 : index
    %0 = vector.load %arg1[%c0, %c0_0] : memref<128x64xf32, #tpu.memory_space<vmem>>, vector<128x64xf32>
    %c0_1 = arith.constant 0 : index
    %c0_2 = arith.constant 0 : index
    %1 = vector.load %arg2[%c0_1, %c0_2] : memref<64x256xf32, #tpu.memory_space<vmem>>, vector<64x256xf32>
    %cst = arith.constant dense<0.000000e+00> : vector<128x256xf32>
    %2 = tpu.matmul %0, %1, %cst {dimension_numbers = #tpu.dot_dimension_numbers<[1], [0], [0], [1], [0, 0, 1, 1], [], []>} : vector<128x64xf32>, vector<64x256xf32>, vector<128x256xf32> -> vector<128x256xf32>
    %c0_3 = arith.constant 0 : index
    %c0_4 = arith.constant 0 : index
    %3 = vector.load %arg3[%c0_3, %c0_4] : memref<1x256xf32, #tpu.memory_space<vmem>>, vector<1x256xf32>
    %4 = vector.broadcast %3 : vector<1x256xf32> to vector<128x256xf32>
    %5 = arith.addf %2, %4 : vector<128x256xf32>
    %c0_5 = arith.constant 0 : index
    %c0_6 = arith.constant 0 : index
    %6 = vector.load %arg4[%c0_5, %c0_6] : memref<128x256xf32, #tpu.memory_space<vmem>>, vector<128x256xf32>
    tpu.vector_store %arg4[%c0_5, %c0_6], %5 {strides = array<i32>} : memref<128x256xf32, #tpu.memory_space<vmem>>, vector<128x256xf32>,
    return
  }
  func.func @transform_0(%arg0: i32) -> (i32, i32) {
    %c0_i32 = arith.constant 0 : i32
    %c0_i32_0 = arith.constant 0 : i32
    return %arg0, %c0_i32 : i32, i32
  }
  func.func @transform_1(%arg0: i32) -> (i32, i32) {
    %c0_i32 = arith.constant 0 : i32
    %c0_i32_0 = arith.constant 0 : i32
    %c0_i32_1 = arith.constant 0 : i32
    return %c0_i32, %c0_i32_0 : i32, i32
  }
  func.func @transform_2(%arg0: i32) -> (i32, i32) {
    %c0_i32 = arith.constant 0 : i32
    %c0_i32_0 = arith.constant 0 : i32
    %c0_i32_1 = arith.constant 0 : i32
    return %c0_i32, %c0_i32_0 : i32, i32
  }
  func.func @transform_3(%arg0: i32) -> (i32, i32) {
    %c0_i32 = arith.constant 0 : i32
    %c0_i32_0 = arith.constant 0 : i32
    return %arg0, %c0_i32 : i32, i32
  }
}

</mosaic_0001>

<llo_original>
// kernel: tpu_custom_call.1
$region0: #{tpu_custom_call.1}
  #allocation0 [shape = 'u32[]', space=smem, size = 0x4, offset = 0x4, fixed_abs, tag = 'smem constant byte address 0x4 - core index']
  #allocation1 [shape = 'u32[144,128]{1,0:T(1,128)}', space=vmem, size = 0x12000, scoped, tag = 'internal scratch']
  %s0 = inlined_call_operand.vmem [shape: f32[128,64], index: 0, kind: input, shape index: {}]
  %s1 = inlined_call_operand.vmem [shape: f32[64,256], index: 1, kind: input, shape index: {}]
  %s2 = inlined_call_operand.vmem [shape: f32[1,256], index: 2, kind: input, shape index: {}]
  %s3 = inlined_call_operand.hbm [shape: f32[128,256], index: 3, kind: output, shape index: {}]
  %s4 = sld [smem:[#allocation0]]
  $region22: #{tpu_custom_call.1} parent=0
    _
  %s6 = ssub.s32 1, %s4
  %s7 = scalar_select 0, %s6, %s4
  $region1: #{tpu_custom_call.1} parent=0
    #allocation2 [shape = 'u8[131072]{0}', space=vmem, size = 0x20000, scoped, tag = 'output window, operand 0, single buffered']
    #allocation3 [shape = 's32[1]{0}', space=sflag, size = 0x4, scoped, tag = 'scoped memory for tpu_custom_call.1']
    %8 = vsyncpa [#allocation3], 0
    // Predicated region
    $region2: #{tpu_custom_call.1} parent=1 // pred_check
      _
    $region3: #{tpu_custom_call.1} parent=1 // pred_check_branch
      %10 = sbr.rel (0) target = $region5
    $region4: #{tpu_custom_call.1} parent=1 // pred_region
      _
    $region5: #{tpu_custom_call.1} parent=1 // pred_fallthru
      _
    // Predicated region
    $region6: #{tpu_custom_call.1} parent=1 // pred_check
      _
    $region7: #{tpu_custom_call.1} parent=1 // pred_check_branch
      %12 = sbr.rel (0) target = $region9
    $region8: #{tpu_custom_call.1} parent=1 // pred_region
      _
    $region9: #{tpu_custom_call.1} parent=1 // pred_fallthru
      _
    // Predicated region
    $region10: #{tpu_custom_call.1} parent=1 // pred_check
      _
    $region11: #{tpu_custom_call.1} parent=1 // pred_check_branch
      %14 = sbr.rel (0) target = $region13
    $region12: #{tpu_custom_call.1} parent=1 // pred_region
      _
    $region13: #{tpu_custom_call.1} parent=1 // pred_fallthru
      _
    %v15 = vld [vmem:[%s0] sm:$0xff]
    %v16 = vld [vmem:[%s0 + $0x8] sm:$0xff]
    %v17 = vld [vmem:[%s0 + $0x10] sm:$0xff]
    %v18 = vld [vmem:[%s0 + $0x18] sm:$0xff]
    %v19 = vld [vmem:[%s0 + $0x20] sm:$0xff]
    %v20 = vld [vmem:[%s0 + $0x28] sm:$0xff]
    %v21 = vld [vmem:[%s0 + $0x30] sm:$0xff]
    %v22 = vld [vmem:[%s0 + $0x38] sm:$0xff]
    %v23 = vld [vmem:[%s0 + $0x40] sm:$0xff]
    %v24 = vld [vmem:[%s0 + $0x48] sm:$0xff]
    %v25 = vld [vmem:[%s0 + $0x50] sm:$0xff]
    %v26 = vld [vmem:[%s0 + $0x58] sm:$0xff]
    %v27 = vld [vmem:[%s0 + $0x60] sm:$0xff]
    %v28 = vld [vmem:[%s0 + $0x68] sm:$0xff]
    %v29 = vld [vmem:[%s0 + $0x70] sm:$0xff]
    %v30 = vld [vmem:[%s0 + $0x78] sm:$0xff]
    %v31 = vld [vmem:[%s1] sm:$0xff]
    %v32 = vld [vmem:[%s1 + $0x8] sm:$0xff]
    %v33 = vld [vmem:[%s1 + $0x10] sm:$0xff]
    %v34 = vld [vmem:[%s1 + $0x18] sm:$0xff]
    %v35 = vld [vmem:[%s1 + $0x20] sm:$0xff]
    %v36 = vld [vmem:[%s1 + $0x28] sm:$0xff]
    %v37 = vld [vmem:[%s1 + $0x30] sm:$0xff]
    %v38 = vld [vmem:[%s1 + $0x38] sm:$0xff]
    %v39 = vld [vmem:[%s1 + $0x40] sm:$0xff]
    %v40 = vld [vmem:[%s1 + $0x48] sm:$0xff]
    %v41 = vld [vmem:[%s1 + $0x50] sm:$0xff]
    %v42 = vld [vmem:[%s1 + $0x58] sm:$0xff]
    %v43 = vld [vmem:[%s1 + $0x60] sm:$0xff]
    %v44 = vld [vmem:[%s1 + $0x68] sm:$0xff]
    %v45 = vld [vmem:[%s1 + $0x70] sm:$0xff]
    %v46 = vld [vmem:[%s1 + $0x78] sm:$0xff]
    %v47 = vld [vmem:[%s2] sm:$0x3]
    %v49 = vlaneseq
    %v50 = vshrl.u32 %v49, 7
    %v51 = vsub.s32 0, %v50
    %v52 = vrot.slane %v47, %v51
    %v53 = vlaneseq
    %v54 = vshrl.u32 %v53, 7
    %v55 = vsub.s32 1, %v54
    %v56 = vrot.slane %v47, %v55
    %vm59 = vcmask 523264
    %v61 = vsel %vm59, %v15, 0
    %v64 = vsel %vm59, %v16, 0
    %v67 = vsel %vm59, %v17, 0
    %v70 = vsel %vm59, %v18, 0
    %v73 = vsel %vm59, %v19, 0
    %v76 = vsel %vm59, %v20, 0
    %v79 = vsel %vm59, %v21, 0
    %v82 = vsel %vm59, %v22, 0
    %v85 = vsel %vm59, %v23, 0
    %v88 = vsel %vm59, %v24, 0
    %v91 = vsel %vm59, %v25, 0
    %v94 = vsel %vm59, %v26, 0
    %v97 = vsel %vm59, %v27, 0
    %v100 = vsel %vm59, %v28, 0
    %v103 = vsel %vm59, %v29, 0
    %v106 = vsel %vm59, %v30, 0
    %108 = vmatprep.subr.mxu0 0.0
    %109 = vmatpush1.msra.mxu0 0.0
    %110 = vmatprep.subr.mxu0 0.0
    %111 = vmatpush1.msra.mxu0 0.0
    %112 = vmatprep.subr.mxu0 0.0
    %113 = vmatpush1.msra.mxu0 0.0
    %114 = vmatprep.subr.mxu0 0.0
    %115 = vmatpush1.msra.mxu0 0.0
    %116 = vmatprep.subr.mxu0 0.0
    %117 = vmatpush1.msra.mxu0 0.0
    %118 = vmatprep.subr.mxu0 0.0
    %119 = vmatpush1.msra.mxu0 0.0
    %120 = vmatprep.subr.mxu0 0.0
    %121 = vmatpush1.msra.mxu0 0.0
    %122 = vmatprep.subr.mxu0 0.0
    %123 = vmatpush1.msra.mxu0 0.0
    %124 = vmatprep.subr.mxu0 %v46
    %125 = vmatpush1.msra.mxu0 %v45
    %126 = vmatprep.subr.mxu0 %v44
    %127 = vmatpush1.msra.mxu0 %v43
    %128 = vmatprep.subr.mxu0 %v42
    %129 = vmatpush1.msra.mxu0 %v41
    %130 = vmatprep.subr.mxu0 %v40
    %131 = vmatpush1.msra.mxu0 %v39
    %132 = vmatprep.subr.mxu0 %v38
    %133 = vmatpush1.msra.mxu0 %v37
    %134 = vmatprep.subr.mxu0 %v36
    %135 = vmatpush1.msra.mxu0 %v35
    %136 = vmatprep.subr.mxu0 %v34
    %137 = vmatpush1.msra.mxu0 %v33
    %138 = vmatprep.subr.mxu0 %v32
    %139 = vmatpush1.msra.mxu0 %v31
    %140 = vmatprep.subr.mxu0 0.0
    %141 = vmatpush2.msra.mxu0 0.0
    %142 = vmatprep.subr.mxu0 0.0
    %143 = vmatpush2.msra.mxu0 0.0
    %144 = vmatprep.subr.mxu0 0.0
    %145 = vmatpush2.msra.mxu0 0.0
    %146 = vmatprep.subr.mxu0 0.0
    %147 = vmatpush2.msra.mxu0 0.0
    %148 = vmatprep.subr.mxu0 0.0
    %149 = vmatpush2.msra.mxu0 0.0
    %150 = vmatprep.subr.mxu0 0.0
    %151 = vmatpush2.msra.mxu0 0.0
    %152 = vmatprep.subr.mxu0 0.0
    %153 = vmatpush2.msra.mxu0 0.0
    %154 = vmatprep.subr.mxu0 0.0
    %155 = vmatpush2.msra.mxu0 0.0
    %156 = vmatprep.subr.mxu0 0.0
    %157 = vmatpush2.msra.mxu0 0.0
    %158 = vmatprep.subr.mxu0 0.0
    %159 = vmatpush2.msra.mxu0 0.0
    %160 = vmatprep.subr.mxu0 0.0
    %161 = vmatpush2.msra.mxu0 0.0
    %162 = vmatprep.subr.mxu0 0.0
    %163 = vmatpush2.msra.mxu0 0.0
    %164 = vmatprep.subr.mxu0 0.0
    %165 = vmatpush2.msra.mxu0 0.0
    %166 = vmatprep.subr.mxu0 0.0
    %167 = vmatpush2.msra.mxu0 0.0
    %168 = vmatprep.subr.mxu0 0.0
    %169 = vmatpush2.msra.mxu0 0.0
    %170 = vmatprep.subr.mxu0 0.0
    %171 = vmatpush2.msra.mxu0 0.0
    %172 = vmatprep.mubr.f32.mxu0 0.0
    %173 = vmatmul.mubr.f32.gmra.mxu0 %v61
    %v174 = vpop.f32.mrf.mxu0
    %v175 = vadd.f32 %v52, %v174
    %v176 = vpop.f32.mrf.mxu0
    %v177 = vadd.f32 %v56, %v176
    %178 = vmatprep.mubr.f32.mxu0 0.0
    %179 = vmatmul.mubr.f32.gmra.mxu0 %v64
    %v180 = vpop.f32.mrf.mxu0
    %v181 = vadd.f32 %v52, %v180
    %v182 = vpop.f32.mrf.mxu0
    %v183 = vadd.f32 %v56, %v182
    %184 = vmatprep.mubr.f32.mxu0 0.0
    %185 = vmatmul.mubr.f32.gmra.mxu0 %v67
    %v186 = vpop.f32.mrf.mxu0
    %v187 = vadd.f32 %v52, %v186
    %v188 = vpop.f32.mrf.mxu0
    %v189 = vadd.f32 %v56, %v188
    %190 = vmatprep.mubr.f32.mxu0 0.0
    %191 = vmatmul.mubr.f32.gmra.mxu0 %v70
    %v192 = vpop.f32.mrf.mxu0
    %v193 = vadd.f32 %v52, %v192
    %v194 = vpop.f32.mrf.mxu0
    %v195 = vadd.f32 %v56, %v194
    %196 = vmatprep.mubr.f32.mxu0 0.0
    %197 = vmatmul.mubr.f32.gmra.mxu0 %v73
    %v198 = vpop.f32.mrf.mxu0
    %v199 = vadd.f32 %v52, %v198
    %v200 = vpop.f32.mrf.mxu0
    %v201 = vadd.f32 %v56, %v200
    %202 = vmatprep.mubr.f32.mxu0 0.0
    %203 = vmatmul.mubr.f32.gmra.mxu0 %v76
    %v204 = vpop.f32.mrf.mxu0
    %v205 = vadd.f32 %v52, %v204
    %v206 = vpop.f32.mrf.mxu0
    %v207 = vadd.f32 %v56, %v206
    %208 = vmatprep.mubr.f32.mxu0 0.0
    %209 = vmatmul.mubr.f32.gmra.mxu0 %v79
    %v210 = vpop.f32.mrf.mxu0
    %v211 = vadd.f32 %v52, %v210
    %v212 = vpop.f32.mrf.mxu0
    %v213 = vadd.f32 %v56, %v212
    %214 = vmatprep.mubr.f32.mxu0 0.0
    %215 = vmatmul.mubr.f32.gmra.mxu0 %v82
    %v216 = vpop.f32.mrf.mxu0
    %v217 = vadd.f32 %v52, %v216
    %v218 = vpop.f32.mrf.mxu0
    %v219 = vadd.f32 %v56, %v218
    %220 = vmatprep.mubr.f32.mxu0 0.0
    %221 = vmatmul.mubr.f32.gmra.mxu0 %v85
    %v222 = vpop.f32.mrf.mxu0
    %v223 = vadd.f32 %v52, %v222
    %v224 = vpop.f32.mrf.mxu0
    %v225 = vadd.f32 %v56, %v224
    %226 = vmatprep.mubr.f32.mxu0 0.0
    %227 = vmatmul.mubr.f32.gmra.mxu0 %v88
    %v228 = vpop.f32.mrf.mxu0
    %v229 = vadd.f32 %v52, %v228
    %v230 = vpop.f32.mrf.mxu0
    %v231 = vadd.f32 %v56, %v230
    %232 = vmatprep.mubr.f32.mxu0 0.0
    %233 = vmatmul.mubr.f32.gmra.mxu0 %v91
    %v234 = vpop.f32.mrf.mxu0
    %v235 = vadd.f32 %v52, %v234
    %v236 = vpop.f32.mrf.mxu0
    %v237 = vadd.f32 %v56, %v236
    %238 = vmatprep.mubr.f32.mxu0 0.0
    %239 = vmatmul.mubr.f32.gmra.mxu0 %v94
    %v240 = vpop.f32.mrf.mxu0
    %v241 = vadd.f32 %v52, %v240
    %v242 = vpop.f32.mrf.mxu0
    %v243 = vadd.f32 %v56, %v242
    %244 = vmatprep.mubr.f32.mxu0 0.0
    %245 = vmatmul.mubr.f32.gmra.mxu0 %v97
    %v246 = vpop.f32.mrf.mxu0
    %v247 = vadd.f32 %v52, %v246
    %v248 = vpop.f32.mrf.mxu0
    %v249 = vadd.f32 %v56, %v248
    %250 = vmatprep.mubr.f32.mxu0 0.0
    %251 = vmatmul.mubr.f32.gmra.mxu0 %v100
    %v252 = vpop.f32.mrf.mxu0
    %v253 = vadd.f32 %v52, %v252
    %v254 = vpop.f32.mrf.mxu0
    %v255 = vadd.f32 %v56, %v254
    %256 = vmatprep.mubr.f32.mxu0 0.0
    %257 = vmatmul.mubr.f32.gmra.mxu0 %v103
    %v258 = vpop.f32.mrf.mxu0
    %v259 = vadd.f32 %v52, %v258
    %v260 = vpop.f32.mrf.mxu0
    %v261 = vadd.f32 %v56, %v260
    %262 = vmatprep.mubr.f32.mxu0 0.0
    %263 = vmatmul.mubr.f32.gmra.mxu0 %v106
    %v264 = vpop.f32.mrf.mxu0
    %v265 = vadd.f32 %v52, %v264
    %v266 = vpop.f32.mrf.mxu0
    %v267 = vadd.f32 %v56, %v266
    %268 = vdwg.mxu0
    %269 = vst [vmem:[#allocation2] sm:$0xff] %v175
    %270 = vst [vmem:[#allocation2 + $0x8] sm:$0xff] %v177
    %271 = vst [vmem:[#allocation2 + $0x10] sm:$0xff] %v181
    %272 = vst [vmem:[#allocation2 + $0x18] sm:$0xff] %v183
    %273 = vst [vmem:[#allocation2 + $0x20] sm:$0xff] %v187
    %274 = vst [vmem:[#allocation2 + $0x28] sm:$0xff] %v189
    %275 = vst [vmem:[#allocation2 + $0x30] sm:$0xff] %v193
    %276 = vst [vmem:[#allocation2 + $0x38] sm:$0xff] %v195
    %277 = vst [vmem:[#allocation2 + $0x40] sm:$0xff] %v199
    %278 = vst [vmem:[#allocation2 + $0x48] sm:$0xff] %v201
    %279 = vst [vmem:[#allocation2 + $0x50] sm:$0xff] %v205
    %280 = vst [vmem:[#allocation2 + $0x58] sm:$0xff] %v207
    %281 = vst [vmem:[#allocation2 + $0x60] sm:$0xff] %v211
    %282 = vst [vmem:[#allocation2 + $0x68] sm:$0xff] %v213
    %283 = vst [vmem:[#allocation2 + $0x70] sm:$0xff] %v217
    %284 = vst [vmem:[#allocation2 + $0x78] sm:$0xff] %v219
    %285 = vst [vmem:[#allocation2 + $0x80] sm:$0xff] %v223
    %286 = vst [vmem:[#allocation2 + $0x88] sm:$0xff] %v225
    %287 = vst [vmem:[#allocation2 + $0x90] sm:$0xff] %v229
    %288 = vst [vmem:[#allocation2 + $0x98] sm:$0xff] %v231
    %289 = vst [vmem:[#allocation2 + $0xa0] sm:$0xff] %v235
    %290 = vst [vmem:[#allocation2 + $0xa8] sm:$0xff] %v237
    %291 = vst [vmem:[#allocation2 + $0xb0] sm:$0xff] %v241
    %292 = vst [vmem:[#allocation2 + $0xb8] sm:$0xff] %v243
    %293 = vst [vmem:[#allocation2 + $0xc0] sm:$0xff] %v247
    %294 = vst [vmem:[#allocation2 + $0xc8] sm:$0xff] %v249
    %295 = vst [vmem:[#allocation2 + $0xd0] sm:$0xff] %v253
    %296 = vst [vmem:[#allocation2 + $0xd8] sm:$0xff] %v255
    %297 = vst [vmem:[#allocation2 + $0xe0] sm:$0xff] %v259
    %298 = vst [vmem:[#allocation2 + $0xe8] sm:$0xff] %v261
    %299 = vst [vmem:[#allocation2 + $0xf0] sm:$0xff] %v265
    %300 = vst [vmem:[#allocation2 + $0xf8] sm:$0xff] %v267
    // Predicated region
    $region14: #{tpu_custom_call.1} parent=1 // pred_check
      _
    $region15: #{tpu_custom_call.1} parent=1 // pred_check_branch
      %302 = sbr.rel (0) target = $region17
    $region16: #{tpu_custom_call.1} parent=1 // pred_region
      %s304 = ssub.s32 4096, 4096
      %305 = vsyncadd [#allocation3], %s304
      %s306 = sshll.u32 [#allocation2], 4
      %s307 = int_to_ptr.vmem [resolvable:$true] %s306
      %312 = dma.vmem_to_hbm [thread:$0]  %s307, 4096, %s3, [#allocation3], 256, 256, 16
    $region17: #{tpu_custom_call.1} parent=1 // pred_fallthru
      _
    // Predicated region
    $region18: #{tpu_custom_call.1} parent=1 // pred_check
      _
    $region19: #{tpu_custom_call.1} parent=1 // pred_check_branch
      %314 = sbr.rel (0) target = $region21
    $region20: #{tpu_custom_call.1} parent=1 // pred_region
      %315 = dma.done [#allocation3], 4096
    $region21: #{tpu_custom_call.1} parent=1 // pred_fallthru
      _
    %316 = vsyncpa [#allocation3], 1

</llo_original>
